<compile_context>
chip_gen: v6e
topology: v6e:2x2x1
jax: 0.10.0
libtpu: 0.0.40
codegen_flags: <defaults>
</compile_context>

<pallas_src>
import functools

import jax
import jax.numpy as jnp
from jax.experimental import pallas as pl
from jax.experimental.pallas import tpu as pltpu

_LANE = 128
_ROW_ALIGN = 16                      # sublane-safe for f32 and bf16/fp16 tiles
_NEG_BIG = -1e30                     # finite "-inf": exp() underflows to 0 and
                                     # 0 * 1e30 == 0 (no NaN from padded lanes)
_MAX_TILE_ROWS = 1024                # 512-1024 row tiles ~ HBM roofline
_TILE_F32_BUDGET = 2 * 1024 * 1024   # bytes per f32 (TILE_N, C_pad) temporary
_VMEM_LIMIT = 48 * 1024 * 1024       # safe on v5e/v6e (128 MiB) and v7x (64 MiB)


def _round_up(x, m):
    return ((x + m - 1) // m) * m


def _wsl_kernel(pred_ref, tgt_ref, out_ref, acc_ref, *,
                c_valid, c_pad, tile_n, steps, inv_n):
    i = pl.program_id(1)

    @pl.when(i == 0)
    def _init():
        acc_ref[...] = jnp.zeros_like(acc_ref)

    pred = pred_ref[...].astype(jnp.float32)            # (tile_n, c_pad)
    tgt = tgt_ref[...].astype(jnp.float32)              # (tile_n, c_pad)

    if c_pad != c_valid:
        lane = jax.lax.broadcasted_iota(jnp.int32, (tile_n, c_pad), 1)
        valid = lane < c_valid
        pred = jnp.where(valid, pred, _NEG_BIG)          # drop from logsumexp
        tgt = jnp.where(valid, tgt, 0.0)                 # drop from KL sum

    # tar_sum = sum(target, dim=1, keepdim=True); zeros -> 1e-6
    tar_sum = jnp.sum(tgt, axis=1, keepdims=True)        # (tile_n, 1)
    tar_sum = jnp.where(tar_sum == 0.0, 1e-6, tar_sum)
    log_tar_sum = jnp.log(tar_sum)

    # numerically stable log_softmax(pred, dim=1)
    m = jnp.max(pred, axis=1, keepdims=True)
    shifted = pred - m
    lse = jnp.log(jnp.sum(jnp.exp(shifted), axis=1, keepdims=True))
    log_x = shifted - lse                                 # (tile_n, c_pad)

    # kl * tar_sum with the normalization folded in algebraically:
    #   tgt * (log(tgt) - log(tar_sum) - log_x), with tgt==0 elements -> 0
    tgt_pos = tgt != 0.0
    log_tgt = jnp.where(tgt_pos,
                        jnp.log(jnp.where(tgt_pos, tgt, 1.0)),
                        0.0)
    per_elem = tgt * (log_tgt - log_tar_sum - log_x)
    row_loss = jnp.sum(per_elem, axis=1, keepdims=True)   # (tile_n, 1)
    acc_ref[...] += jnp.sum(row_loss, axis=0, keepdims=True)

    @pl.when(i == steps - 1)
    def _finalize():
        out_ref[...] = jnp.broadcast_to(acc_ref[...] * inv_n, (1, _LANE))


def weighted_softmax_loss(pred_score, target_score, *, num_parts=2):
    """Pallas TPU implementation of the PyTorch weighted_softmax_loss forward."""
    assert pred_score.shape == target_score.shape
    assert pred_score.ndim == 2, "expected (N, C) inputs"
    n, c = pred_score.shape

    c_pad = _round_up(c, _LANE)

    # Largest row tile (multiple of 16) that keeps one f32 tile within budget
    # and does not over-pad small batches; capped at the 512-1024 row sweet
    # spot for pipelined memory-bound kernels.
    rows_budget = max(1, _TILE_F32_BUDGET // (c_pad * 4))
    per_part_rows = pl.cdiv(n, num_parts)
    tile_n = min(_MAX_TILE_ROWS, rows_budget, per_part_rows)
    tile_n = _round_up(max(tile_n, 1), _ROW_ALIGN)

    steps = pl.cdiv(per_part_rows, tile_n)
    n_pad = num_parts * steps * tile_n

    if n_pad != n or c_pad != c:
        pad = ((0, n_pad - n), (0, c_pad - c))
        pred_score = jnp.pad(pred_score, pad)        # padded pred rows are 0
        target_score = jnp.pad(target_score, pad)    # padded tgt is 0 -> 0 loss

    kernel = functools.partial(
        _wsl_kernel, c_valid=c, c_pad=c_pad, tile_n=tile_n, steps=steps,
        inv_n=1.0 / n)

    row_map = lambda p, i: (p * steps + i, 0)

    partials = pl.pallas_call(
        kernel,
        out_shape=jax.ShapeDtypeStruct((1, num_parts * _LANE), jnp.float32),
        grid_spec=pltpu.PrefetchScalarGridSpec(
            num_scalar_prefetch=0,
            grid=(num_parts, steps),
            in_specs=[
                pl.BlockSpec((tile_n, c_pad), row_map),
                pl.BlockSpec((tile_n, c_pad), row_map),
            ],
            out_specs=pl.BlockSpec((1, _LANE), lambda p, i: (0, p)),
            scratch_shapes=[pltpu.VMEM((1, 1), jnp.float32)],
        ),
        compiler_params=pltpu.CompilerParams(
            dimension_semantics=("parallel", "arbitrary"),
            vmem_limit_bytes=_VMEM_LIMIT,
        ),
    )(pred_score, target_score)

    # One f32 partial per part, replicated across its 128 lanes; take lane 0.
    return jnp.sum(partials[0, ::_LANE])


def _reference(pred_score, target_score):
    # Pure-JAX reference of the PyTorch forward, for the sanity check.
    pred = pred_score.astype(jnp.float32)
    tgt = target_score.astype(jnp.float32)
    tar_sum = jnp.sum(tgt, axis=1, keepdims=True)
    tar_sum = jnp.where(tar_sum == 0.0, 1e-6, tar_sum)
    tar = tgt / tar_sum
    log_x = jax.nn.log_softmax(pred, axis=1)
    log_y = jnp.where(tar == 0.0, 0.0, jnp.log(jnp.where(tar == 0.0, 1.0, tar)))
    kl = jnp.sum(tar * (log_y - log_x), axis=1, keepdims=True)
    loss = kl * tar_sum
    return jnp.sum(loss) / loss.shape[0]


if __name__ == "__main__":
    key = jax.random.PRNGKey(0)
    k1, k2, k3, k4 = jax.random.split(key, 4)

    # Case 1: small f32 problem; one all-zero target row exercises the
    # tar_sum == 0 -> 1e-6 path.
    N, C = 8, 32
    pred = jax.random.normal(k1, (N, C), dtype=jnp.float32)
    tgt = jax.random.uniform(k2, (N, C), dtype=jnp.float32)
    tgt = tgt.at[3].set(0.0)

    out = jax.block_until_ready(weighted_softmax_loss(pred, tgt))
    ref = jax.block_until_ready(_reference(pred, tgt))
    assert jnp.allclose(out, ref, rtol=1e-5, atol=1e-5), (out, ref)

    # Case 2: bf16 inputs (halved HBM traffic) with ragged N and C to
    # exercise the row / lane padding and masking paths.
    N2, C2 = 11, 40
    pred2 = jax.random.normal(k3, (N2, C2), dtype=jnp.bfloat16)
    tgt2 = jax.random.uniform(k4, (N2, C2), dtype=jnp.bfloat16)
    tgt2 = tgt2.at[0].set(0.0)

    out2 = jax.block_until_ready(weighted_softmax_loss(pred2, tgt2))
    ref2 = jax.block_until_ready(_reference(pred2, tgt2))
    assert jnp.allclose(out2, ref2, rtol=1e-4, atol=1e-4), (out2, ref2)

    print("KERNEL_OK")
</pallas_src>

<mosaic_0001>
module attributes {stable_mosaic.version = 11 : i64} {
  func.func @_wsl_kernel(%arg0: i32, %arg1: i32, %arg2: memref<16x128xf32, #tpu.memory_space<vmem>>, %arg3: memref<16x128xf32, #tpu.memory_space<vmem>>, %arg4: memref<1x128xf32, #tpu.memory_space<vmem>>, %arg5: memref<1x1xf32, #tpu.memory_space<vmem>>) attributes {dimension_semantics = [#tpu.dimension_semantics<parallel>, #tpu.dimension_semantics<arbitrary>], iteration_bounds = array<i64: 2, 1>, scalar_prefetch = 0 : i64, scratch_operands = 1 : i64, tpu.core_type = #tpu.core_type<tc>, window_params = [{transform_indices = @transform_0, window_bounds = array<i64: 16, 128>}, {transform_indices = @transform_1, window_bounds = array<i64: 16, 128>}, {transform_indices = @transform_2, window_bounds = array<i64: 1, 128>}]} {
    %c0_i32 = arith.constant 0 : i32
    %0 = arith.cmpi eq, %arg1, %c0_i32 : i32
    %1 = arith.extui %0 : i1 to i32
    %c0_i32_0 = arith.constant 0 : i32
    %2 = arith.cmpi ne, %1, %c0_i32_0 : i32
    scf.if %2 {
      %cst_21 = arith.constant 0.000000e+00 : f32
      %50 = vector.broadcast %cst_21 : f32 to vector<1x1xf32>
      %c0_22 = arith.constant 0 : index
      %c0_23 = arith.constant 0 : index
      %51 = vector.load %arg5[%c0_22, %c0_23] : memref<1x1xf32, #tpu.memory_space<vmem>>, vector<1x1xf32>
      tpu.vector_store %arg5[%c0_22, %c0_23], %50 {strides = array<i32>} : memref<1x1xf32, #tpu.memory_space<vmem>>, vector<1x1xf32>,
    } else {
    }
    %c0 = arith.constant 0 : index
    %c0_1 = arith.constant 0 : index
    %3 = vector.load %arg2[%c0, %c0_1] : memref<16x128xf32, #tpu.memory_space<vmem>>, vector<16x128xf32>
    %c0_2 = arith.constant 0 : index
    %c0_3 = arith.constant 0 : index
    %4 = vector.load %arg3[%c0_2, %c0_3] : memref<16x128xf32, #tpu.memory_space<vmem>>, vector<16x128xf32>
    %5 = tpu.iota {dimensions = array<i32: 1>} : vector<16x128xi32>
    %c32_i32 = arith.constant 32 : i32
    %6 = vector.broadcast %c32_i32 : i32 to vector<16x128xi32>
    %7 = arith.cmpi slt, %5, %6 : vector<16x128xi32>
    %cst = arith.constant -1.000000e+30 : f32
    %8 = vector.broadcast %cst : f32 to vector<16x128xf32>
    %9 = arith.select %7, %3, %8 : vector<16x128xi1>, vector<16x128xf32>
    %cst_4 = arith.constant 0.000000e+00 : f32
    %10 = vector.broadcast %cst_4 : f32 to vector<16x128xf32>
    %11 = arith.select %7, %4, %10 : vector<16x128xi1>, vector<16x128xf32>
    %cst_5 = arith.constant dense<0.000000e+00> : vector<16xf32>
    %12 = vector.multi_reduction <add>, %11, %cst_5 [1] : vector<16x128xf32> to vector<16xf32>
    %13 = vector.shape_cast %12 : vector<16xf32> to vector<16x1xf32>
    %cst_6 = arith.constant 0.000000e+00 : f32
    %14 = vector.broadcast %cst_6 : f32 to vector<16x1xf32>
    %15 = arith.cmpf oeq, %13, %14 : vector<16x1xf32>
    %cst_7 = arith.constant 9.99999997E-7 : f32
    %16 = vector.broadcast %cst_7 : f32 to vector<16x1xf32>
    %17 = arith.select %15, %16, %13 : vector<16x1xi1>, vector<16x1xf32>
    %18 = math.log %17 : vector<16x1xf32>
    %cst_8 = arith.constant dense<0xFF800000> : vector<16xf32>
    %19 = vector.multi_reduction <maximumf>, %9, %cst_8 [1] : vector<16x128xf32> to vector<16xf32>
    %20 = vector.shape_cast %19 : vector<16xf32> to vector<16x1xf32>
    %21 = vector.broadcast %20 : vector<16x1xf32> to vector<16x128xf32>
    %22 = arith.subf %9, %21 : vector<16x128xf32>
    %23 = math.exp %22 : vector<16x128xf32>
    %cst_9 = arith.constant dense<0.000000e+00> : vector<16xf32>
    %24 = vector.multi_reduction <add>, %23, %cst_9 [1] : vector<16x128xf32> to vector<16xf32>
    %25 = vector.shape_cast %24 : vector<16xf32> to vector<16x1xf32>
    %26 = math.log %25 : vector<16x1xf32>
    %27 = vector.broadcast %26 : vector<16x1xf32> to vector<16x128xf32>
    %28 = arith.subf %22, %27 : vector<16x128xf32>
    %cst_10 = arith.constant 0.000000e+00 : f32
    %29 = vector.broadcast %cst_10 : f32 to vector<16x128xf32>
    %30 = arith.cmpf one, %11, %29 : vector<16x128xf32>
    %cst_11 = arith.constant 1.000000e+00 : f32
    %31 = vector.broadcast %cst_11 : f32 to vector<16x128xf32>
    %32 = arith.select %30, %11, %31 : vector<16x128xi1>, vector<16x128xf32>
    %33 = math.log %32 : vector<16x128xf32>
    %cst_12 = arith.constant 0.000000e+00 : f32
    %34 = vector.broadcast %cst_12 : f32 to vector<16x128xf32>
    %35 = arith.select %30, %33, %34 : vector<16x128xi1>, vector<16x128xf32>
    %36 = vector.broadcast %18 : vector<16x1xf32> to vector<16x128xf32>
    %37 = arith.subf %35, %36 : vector<16x128xf32>
    %38 = arith.subf %37, %28 : vector<16x128xf32>
    %39 = arith.mulf %11, %38 : vector<16x128xf32>
    %cst_13 = arith.constant dense<0.000000e+00> : vector<16xf32>
    %40 = vector.multi_reduction <add>, %39, %cst_13 [1] : vector<16x128xf32> to vector<16xf32>
    %41 = vector.shape_cast %40 : vector<16xf32> to vector<16x1xf32>
    %c0_14 = arith.constant 0 : index
    %c0_15 = arith.constant 0 : index
    %42 = vector.load %arg5[%c0_14, %c0_15] : memref<1x1xf32, #tpu.memory_space<vmem>>, vector<1x1xf32>
    %cst_16 = arith.constant dense<0.000000e+00> : vector<1xf32>
    %43 = vector.multi_reduction <add>, %41, %cst_16 [0] : vector<16x1xf32> to vector<1xf32>
    %44 = vector.shape_cast %43 : vector<1xf32> to vector<1x1xf32>
    %45 = arith.addf %42, %44 : vector<1x1xf32>
    %c0_17 = arith.constant 0 : index
    %c0_18 = arith.constant 0 : index
    %46 = vector.load %arg5[%c0_17, %c0_18] : memref<1x1xf32, #tpu.memory_space<vmem>>, vector<1x1xf32>
    tpu.vector_store %arg5[%c0_17, %c0_18], %45 {strides = array<i32>} : memref<1x1xf32, #tpu.memory_space<vmem>>, vector<1x1xf32>,
    %c0_i32_19 = arith.constant 0 : i32
    %47 = arith.cmpi eq, %arg1, %c0_i32_19 : i32
    %48 = arith.extui %47 : i1 to i32
    %c0_i32_20 = arith.constant 0 : i32
    %49 = arith.cmpi ne, %48, %c0_i32_20 : i32
    scf.if %49 {
      %c0_21 = arith.constant 0 : index
      %c0_22 = arith.constant 0 : index
      %50 = vector.load %arg5[%c0_21, %c0_22] : memref<1x1xf32, #tpu.memory_space<vmem>>, vector<1x1xf32>
      %cst_23 = arith.constant 1.250000e-01 : f32
      %51 = vector.broadcast %cst_23 : f32 to vector<1x1xf32>
      %52 = arith.mulf %50, %51 : vector<1x1xf32>
      %53 = vector.shape_cast %52 : vector<1x1xf32> to vector<1x1xf32>
      %54 = vector.broadcast %53 : vector<1x1xf32> to vector<1x128xf32>
      %c0_24 = arith.constant 0 : index
      %c0_25 = arith.constant 0 : index
      %55 = vector.load %arg4[%c0_24, %c0_25] : memref<1x128xf32, #tpu.memory_space<vmem>>, vector<1x128xf32>
      tpu.vector_store %arg4[%c0_24, %c0_25], %54 {strides = array<i32>} : memref<1x128xf32, #tpu.memory_space<vmem>>, vector<1x128xf32>,
    } else {
    }
    return
  }
  func.func @transform_0(%arg0: i32, %arg1: i32) -> (i32, i32) {
    %c1_i32 = arith.constant 1 : i32
    %0 = arith.muli %arg0, %c1_i32 : i32
    %1 = arith.addi %0, %arg1 : i32
    %c0_i32 = arith.constant 0 : i32
    %c0_i32_0 = arith.constant 0 : i32
    return %1, %c0_i32 : i32, i32
  }
  func.func @transform_1(%arg0: i32, %arg1: i32) -> (i32, i32) {
    %c1_i32 = arith.constant 1 : i32
    %0 = arith.muli %arg0, %c1_i32 : i32
    %1 = arith.addi %0, %arg1 : i32
    %c0_i32 = arith.constant 0 : i32
    %c0_i32_0 = arith.constant 0 : i32
    return %1, %c0_i32 : i32, i32
  }
  func.func @transform_2(%arg0: i32, %arg1: i32) -> (i32, i32) {
    %c0_i32 = arith.constant 0 : i32
    %c0_i32_0 = arith.constant 0 : i32
    return %c0_i32, %arg0 : i32, i32
  }
}

</mosaic_0001>

<llo_original>
// kernel: tpu_custom_call.1
$region0: #{tpu_custom_call.1}
  #allocation0 [shape = 'u32[]', space=smem, size = 0x4, offset = 0x4, fixed_abs, tag = 'smem constant byte address 0x4 - core index']
  #allocation1 [shape = 'u32[144,128]{1,0:T(1,128)}', space=vmem, size = 0x12000, scoped, tag = 'internal scratch']
  #allocation2 [shape = 'f32[1,1]{1,0:T(1,128)}', space=vmem, size = 0x200, scoped, tag = 'scratch operand']
  %s0 = inlined_call_operand.hbm [shape: f32[32,128], index: 0, kind: input, shape index: {}]
  %s1 = inlined_call_operand.hbm [shape: f32[32,128], index: 1, kind: input, shape index: {}]
  %s2 = inlined_call_operand.hbm [shape: f32[1,256], index: 2, kind: output, shape index: {}]
  %s3 = sld [smem:[#allocation0]]
  $region57: #{tpu_custom_call.1} parent=0
    _
  %s5 = ssub.s32 1, %s3
  %s6 = scalar_select 0, %s5, %s3
  $region1: #{tpu_custom_call.1} parent=0
    #allocation3 [shape = 'u8[16384]{0}', space=vmem, size = 0x4000, scoped, tag = 'input window, operand 0']
    #allocation4 [shape = 's32[2]{0}', space=sflag, size = 0x8, scoped, tag = 'scoped memory for tpu_custom_call.1']
    #allocation5 [shape = 's32[2]{0}', space=sflag, size = 0x8, scoped, tag = 'scoped memory for tpu_custom_call.1']
    #allocation6 [shape = 'u8[16384]{0}', space=vmem, size = 0x4000, scoped, tag = 'input window, operand 1']
    #allocation7 [shape = 's32[2]{0}', space=sflag, size = 0x8, scoped, tag = 'scoped memory for tpu_custom_call.1']
    #allocation8 [shape = 'u8[1024]{0}', space=vmem, size = 0x400, scoped, tag = 'output window, operand 0']
    %7 = vsyncpa [#allocation4], 0
    %s8 = scalar_lea.sflag [#allocation4], 1
    %9 = vsyncpa %s8, 0
    %10 = vsyncpa [#allocation7], 0
    %s11 = scalar_lea.sflag [#allocation7], 1
    %12 = vsyncpa %s11, 0
    %13 = vsyncpa [#allocation5], 0
    %s14 = scalar_lea.sflag [#allocation5], 1
    %15 = vsyncpa %s14, 0
    loop: start=0, step=1, limit=4
    $region2: #{tpu_custom_call.1} parent=1 // loop_pre_header
      _
    $region3: #{tpu_custom_call.1} parent=1 // loop_header
      %s17 = sphi 0, %s21
      %p18 = scmp.ge.s32.totalorder %s17, 4
      %s24 = sphi 0, %s36
      %s25 = sphi 0, %s32
      %s26 = sphi 0, %s24
      %s27 = sphi 0, %s25
      %s28 = sphi 0, %s26
      %s29 = sphi 0, %s27
      %s41 = sphi 0, %s43
      %s44 = sphi 0, %s41
      %s45 = sphi 0, %s44
      %s61 = sphi 0, %s45
      %s69 = sphi 0, %s71
      %s72 = sphi 0, %s69
      %s73 = sphi 0, %s72
      %s89 = sphi 0, %s73
      %s95 = sphi 0, %s97
      %s98 = sphi 0, %s95
      %s99 = sphi 0, %s98
      %s115 = sphi 0, %s99
    $region4: #{tpu_custom_call.1} parent=1 // loop_header_branch
      %20 = sbr.rel (%p18) target = $region8
    $region5: #{tpu_custom_call.1} parent=1 // loop_body
      %s22 = ssub.s32 %s17, 1
      %s23 = ssub.s32 %s17, 2
      %s30 = sadd.s32 1, %s25
      %p31 = scmp.ge.s32.totalorder %s30, 1
      %s32 = scalar_select %p31, 0, %s30
      %s33 = sadd.s32 1, %s24
      %s34 = scalar_select %p31, %s33, %s24
      %p35 = scmp.ge.s32.totalorder %s34, 2
      %s36 = scalar_select %p35, 0, %s34
      %s37 = sadd.s32 %s24, %s25
      %s38 = sadd.s32 %s36, %s32
      %s39 = ssub.s32 %s37, %s38
      %p40 = scmp.eq.s32.totalorder %s39, 0
      %s42 = sadd.s32 %s41, 1
      %s43 = scalar_select %p40, %s41, %s42
      %p46 = pneg %p40
      %p47 = scmp.eq.s32.totalorder %s17, 1
      %p48 = por %p46, %p47
      %p49 = scmp.ne.s32.totalorder %s41, %s44
      %p50 = scmp.eq.s32.totalorder %s17, 0
      %p51 = por %p49, %p50
      %p52 = scmp.ne.s32.totalorder %s41, %s44
      %p53 = scmp.eq.s32.totalorder %s22, 1
      %p54 = por %p52, %p53
      %p55 = scmp.ne.s32.totalorder %s44, %s45
      %p56 = scmp.eq.s32.totalorder %s22, 0
      %p57 = por %p55, %p56
      %p58 = scmp.ne.s32.totalorder %s44, %s45
      %p59 = scmp.eq.s32.totalorder %s23, 1
      %p60 = por %p58, %p59
      %p62 = scmp.ne.s32.totalorder %s45, %s61
      %p63 = scmp.eq.s32.totalorder %s23, 0
      %p64 = por %p62, %p63
      %s65 = sadd.s32 %s24, %s25
      %s66 = sadd.s32 %s36, %s32
      %s67 = ssub.s32 %s65, %s66
      %p68 = scmp.eq.s32.totalorder %s67, 0
      %s70 = sadd.s32 %s69, 1
      %s71 = scalar_select %p68, %s69, %s70
      %p74 = pneg %p68
      %p75 = scmp.eq.s32.totalorder %s17, 1
      %p76 = por %p74, %p75
      %p77 = scmp.ne.s32.totalorder %s69, %s72
      %p78 = scmp.eq.s32.totalorder %s17, 0
      %p79 = por %p77, %p78
      %p80 = scmp.ne.s32.totalorder %s69, %s72
      %p81 = scmp.eq.s32.totalorder %s22, 1
      %p82 = por %p80, %p81
      %p83 = scmp.ne.s32.totalorder %s72, %s73
      %p84 = scmp.eq.s32.totalorder %s22, 0
      %p85 = por %p83, %p84
      %p86 = scmp.ne.s32.totalorder %s72, %s73
      %p87 = scmp.eq.s32.totalorder %s23, 1
      %p88 = por %p86, %p87
      %p90 = scmp.ne.s32.totalorder %s73, %s89
      %p91 = scmp.eq.s32.totalorder %s23, 0
      %p92 = por %p90, %p91
      %s93 = ssub.s32 %s24, %s36
      %p94 = scmp.eq.s32.totalorder %s93, 0
      %s96 = sadd.s32 %s95, 1
      %s97 = scalar_select %p94, %s95, %s96
      %p100 = pneg %p94
      %p101 = scmp.eq.s32.totalorder %s17, 1
      %p102 = por %p100, %p101
      %p103 = scmp.ne.s32.totalorder %s95, %s98
      %p104 = scmp.eq.s32.totalorder %s17, 0
      %p105 = por %p103, %p104
      %p106 = scmp.ne.s32.totalorder %s95, %s98
      %p107 = scmp.eq.s32.totalorder %s22, 1
      %p108 = por %p106, %p107
      %p109 = scmp.ne.s32.totalorder %s98, %s99
      %p110 = scmp.eq.s32.totalorder %s22, 0
      %p111 = por %p109, %p110
      %p112 = scmp.ne.s32.totalorder %s98, %s99
      %p113 = scmp.eq.s32.totalorder %s23, 1
      %p114 = por %p112, %p113
      %p116 = scmp.ne.s32.totalorder %s99, %s115
      %p117 = scmp.eq.s32.totalorder %s23, 0
      %p118 = por %p116, %p117
      %p119 = scmp.le.s32.totalorder 1, %s17
      %p120 = scmp.lt.s32.totalorder %s17, 3
      %p121 = pnand %p119, %p120
      %p122 = pneg %p121
      // Predicated region
      $region9: #{tpu_custom_call.1} parent=5 // pred_check
        _
      $region10: #{tpu_custom_call.1} parent=5 // pred_check_branch
        %124 = sbr.rel (%p121) target = $region12
      $region11: #{tpu_custom_call.1} parent=5 // pred_region
        %s125 = ssub.s32 %s17, 1
      $region12: #{tpu_custom_call.1} parent=5 // pred_fallthru
        _
      %p126 = scmp.lt.s32.totalorder %s17, 2
      // Predicated region
      $region13: #{tpu_custom_call.1} parent=5 // pred_check
        %p127 = pneg %p126
      $region14: #{tpu_custom_call.1} parent=5 // pred_check_branch
        %129 = sbr.rel (%p127) target = $region16
      $region15: #{tpu_custom_call.1} parent=5 // pred_region
        // Predicated region
        $region17: #{tpu_custom_call.1} parent=15 // pred_check
          %p130 = pneg %p51
        $region18: #{tpu_custom_call.1} parent=15 // pred_check_branch
          %132 = sbr.rel (%p130) target = $region20
        $region19: #{tpu_custom_call.1} parent=15 // pred_region
          %s133 = sand.u32 %s41, 1
          %s134 = scalar_lea.sflag [#allocation4], %s133
          %s135 = sand.u32 %s41, 1
          %s136 = smul.addr %s135, 16
          %s137 = scalar_lea.vmem [#allocation3], %s136
          %s138 = sadd.s32 %s24, %s25
          %s139 = smul.u32 2, %s138
          %s141 = ssub.s32 256, 256
          %142 = vsyncadd %s134, %s141
          %s143 = smul.addr %s139, 128
          %s144 = scalar_lea.hbm %s0, %s143
          %s145 = sshll.u32 %s137, 4
          %s146 = int_to_ptr.vmem [resolvable:$true] %s145
          %151 = dma.hbm_to_vmem [thread:$0]  %s144, 256, %s146, %s134, 128, 128, 8
        $region20: #{tpu_custom_call.1} parent=15 // pred_fallthru
          _
        // Predicated region
        $region21: #{tpu_custom_call.1} parent=15 // pred_check
          %p152 = pneg %p79
        $region22: #{tpu_custom_call.1} parent=15 // pred_check_branch
          %154 = sbr.rel (%p152) target = $region24
        $region23: #{tpu_custom_call.1} parent=15 // pred_region
          %s155 = sand.u32 %s69, 1
          %s156 = scalar_lea.sflag [#allocation7], %s155
          %s157 = sand.u32 %s69, 1
          %s158 = smul.addr %s157, 16
          %s159 = scalar_lea.vmem [#allocation6], %s158
          %s160 = sadd.s32 %s24, %s25
          %s161 = smul.u32 2, %s160
          %s163 = ssub.s32 256, 256
          %164 = vsyncadd %s156, %s163
          %s165 = smul.addr %s161, 128
          %s166 = scalar_lea.hbm %s1, %s165
          %s167 = sshll.u32 %s159, 4
          %s168 = int_to_ptr.vmem [resolvable:$true] %s167
          %173 = dma.hbm_to_vmem [thread:$0]  %s166, 256, %s168, %s156, 128, 128, 8
        $region24: #{tpu_custom_call.1} parent=15 // pred_fallthru
          _
      $region16: #{tpu_custom_call.1} parent=5 // pred_fallthru
        _
      %p174 = scmp.le.s32.totalorder 1, %s17
      %p175 = scmp.lt.s32.totalorder %s17, 3
      %p176 = pnand %p174, %p175
      %p177 = pneg %p176
      // Predicated region
      $region25: #{tpu_custom_call.1} parent=5 // pred_check
        _
      $region26: #{tpu_custom_call.1} parent=5 // pred_check_branch
        %179 = sbr.rel (%p176) target = $region28
      $region27: #{tpu_custom_call.1} parent=5 // pred_region
        %s180 = ssub.s32 %s17, 1
        %s181 = sand.u32 %s44, 1
        %s182 = scalar_lea.sflag [#allocation4], %s181
        %s183 = sand.u32 %s44, 1
        %s184 = smul.addr %s183, 16
        %s185 = scalar_lea.vmem [#allocation3], %s184
        // Predicated region
        $region29: #{tpu_custom_call.1} parent=27 // pred_check
          %p186 = pneg %p57
        $region30: #{tpu_custom_call.1} parent=27 // pred_check_branch
          %188 = sbr.rel (%p186) target = $region32
        $region31: #{tpu_custom_call.1} parent=27 // pred_region
          %189 = dma.done %s182, 256
        $region32: #{tpu_custom_call.1} parent=27 // pred_fallthru
          _
        %s190 = sand.u32 %s72, 1
        %s191 = scalar_lea.sflag [#allocation7], %s190
        %s192 = sand.u32 %s72, 1
        %s193 = smul.addr %s192, 16
        %s194 = scalar_lea.vmem [#allocation6], %s193
        // Predicated region
        $region33: #{tpu_custom_call.1} parent=27 // pred_check
          %p195 = pneg %p85
        $region34: #{tpu_custom_call.1} parent=27 // pred_check_branch
          %197 = sbr.rel (%p195) target = $region36
        $region35: #{tpu_custom_call.1} parent=27 // pred_region
          %198 = dma.done %s191, 256
        $region36: #{tpu_custom_call.1} parent=27 // pred_fallthru
          _
        %s199 = sand.u32 %s44, 1
        %s200 = scalar_lea.sflag [#allocation4], %s199
        %s201 = sand.u32 %s44, 1
        %s202 = smul.addr %s201, 16
        %s203 = scalar_lea.vmem [#allocation3], %s202
        %p204 = pneg %p57
        %p205 = pneg %p54
        %s206 = sand.u32 %s72, 1
        %s207 = scalar_lea.sflag [#allocation7], %s206
        %s208 = sand.u32 %s72, 1
        %s209 = smul.addr %s208, 16
        %s210 = scalar_lea.vmem [#allocation6], %s209
        %p211 = pneg %p85
        %p212 = pneg %p82
        %p213 = pneg %p111
        %p214 = pneg %p108
        %s215 = sand.u32 %s98, 1
        %s216 = scalar_lea.sflag [#allocation5], %s215
        %s217 = sand.u32 %s98, 1
        %s218 = scalar_lea.vmem [#allocation8], %s217
        %s219 = sadd.s32 %s26, %s27
        %s220 = smul.u32 2, %s219
        %s221 = sadd.s32 %s26, %s27
        %s222 = smul.u32 2, %s221
        %p223 = scmp.eq.s32.totalorder %s27, 0
        // Predicated region
        $region37: #{tpu_custom_call.1} parent=27 // pred_check
          %p224 = pneg %p223
        $region38: #{tpu_custom_call.1} parent=27 // pred_check_branch
          %226 = sbr.rel (%p224) target = $region40
        $region39: #{tpu_custom_call.1} parent=27 // pred_region
          %vm227 = vcmask 0
          %228 = vst.msk [vmem:[#allocation2] sm:$0x1] %vm227, 0.0
        $region40: #{tpu_custom_call.1} parent=27 // pred_fallthru
          _
        %v229 = vld [vmem:[%s185] sm:$0xff]
        %v230 = vld [vmem:[%s185 + $0x8] sm:$0xff]
        %v231 = vld [vmem:[%s194] sm:$0xff]
        %v232 = vld [vmem:[%s194 + $0x8] sm:$0xff]
        %v233 = vlaneseq
        %v234 = vand.u32 %v233, 127
        %vm235 = vcmp.lt.s32.totalorder %v234, 32
        %v236 = vsel %vm235, %v229, -1e+30
        %v237 = vsel %vm235, %v230, -1e+30
        %v238 = vsel %vm235, %v231, 0.0
        %v239 = vsel %vm235, %v232, 0.0
        %240 = vadd.xlane.f32.xlu0 %v238
        %v241 = vpop.xlane.xlu0 %240
        %242 = vadd.xlane.f32.xlu0 %v239
        %v243 = vpop.xlane.xlu0 %242
        %vm244 = vcmp.eq.f32.partialorder %v241, 0.0
        %vm245 = vcmp.eq.f32.partialorder %v243, 0.0
        %v246 = vsel %vm244, 1e-06, %v241
        %v247 = vsel %vm245, 1e-06, %v243
        %v248 = vlog2.pop %v246
        %v249 = vmul.f32 %v248, 0.6931472
        %v250 = vlog2.pop %v247
        %v251 = vmul.f32 %v250, 0.6931472
        %252 = vmax.xlane.f32.xlu0 %v236
        %v253 = vpop.xlane.xlu0 %252
        %254 = vmax.xlane.f32.xlu0 %v237
        %v255 = vpop.xlane.xlu0 %254
        %v256 = vsub.f32 %v236, %v253
        %v257 = vsub.f32 %v237, %v255
        %v258 = vmul.f32 %v256, 1.442695
        %v259 = vpow.pop %v258
        %v260 = vmul.f32 %v257, 1.442695
        %v261 = vpow.pop %v260
        %262 = vadd.xlane.f32.xlu0 %v259
        %v263 = vpop.xlane.xlu0 %262
        %264 = vadd.xlane.f32.xlu0 %v261
        %v265 = vpop.xlane.xlu0 %264
        %v266 = vlog2.pop %v263
        %v267 = vmul.f32 %v266, 0.6931472
        %v268 = vlog2.pop %v265
        %v269 = vmul.f32 %v268, 0.6931472
        %v270 = vsub.f32 %v256, %v267
        %v271 = vsub.f32 %v257, %v269
        %vm272 = vcmp.ne.f32.partialorder %v238, 0.0
        %vm273 = vcmp.ne.f32.partialorder %v239, 0.0
        %v274 = vsel %vm272, %v238, 1.0
        %v275 = vsel %vm273, %v239, 1.0
        %v276 = vlog2.pop %v274
        %v277 = vmul.f32 %v276, 0.6931472
        %v278 = vlog2.pop %v275
        %v279 = vmul.f32 %v278, 0.6931472
        %v280 = vsel %vm272, %v277, 0.0
        %v281 = vsel %vm273, %v279, 0.0
        %v282 = vsub.f32 %v280, %v249
        %v283 = vsub.f32 %v281, %v251
        %v284 = vsub.f32 %v282, %v270
        %v285 = vsub.f32 %v283, %v271
        %v286 = vmul.f32 %v238, %v284
        %v287 = vmul.f32 %v239, %v285
        %288 = vadd.xlane.f32.xlu0 %v286
        %v289 = vpop.xlane.xlu0 %288
        %290 = vadd.xlane.f32.xlu0 %v287
        %v291 = vpop.xlane.xlu0 %290
        %v292 = vld [vmem:[#allocation2] sm:$0x1]
        %v293 = vadd.f32 %v289, %v291
        %v294 = vrot.slane %v293, 4
        %v295 = vadd.f32 %v293, %v294
        %v296 = vrot.slane %v295, 2
        %v297 = vadd.f32 %v295, %v296
        %v298 = vrot.slane %v297, 1
        %v299 = vadd.f32 %v297, %v298
        %v300 = vadd.f32 %v292, %v299
        %vm301 = vcmask 0
        %302 = vst.msk [vmem:[#allocation2] sm:$0x1] %vm301, %v300
        // Predicated region
        $region41: #{tpu_custom_call.1} parent=27 // pred_check
          %p303 = pneg %p223
        $region42: #{tpu_custom_call.1} parent=27 // pred_check_branch
          %305 = sbr.rel (%p303) target = $region44
        $region43: #{tpu_custom_call.1} parent=27 // pred_region
          %v306 = vld [vmem:[#allocation2] sm:$0x1]
          %v307 = vmul.f32 %v306, 0.125
          %309 = vset.pattern.permute.xlu0 0
          %310 = vperm.xlu0 %309, %v307
          %v311 = vpop.permute.xlu0 %310
          %v313 = vlaneseq
          %v314 = vshrl.u32 %v313, 7
          %v315 = vsub.s32 0, %v314
          %v316 = vrot.slane %v311, %v315
          %317 = vst [vmem:[%s218] sm:$0x1] %v316
        $region44: #{tpu_custom_call.1} parent=27 // pred_fallthru
          _
        %s318 = sand.u32 %s98, 1
        %s319 = scalar_lea.sflag [#allocation5], %s318
        %s320 = sand.u32 %s98, 1
        %s321 = scalar_lea.vmem [#allocation8], %s320
        // Predicated region
        $region45: #{tpu_custom_call.1} parent=27 // pred_check
          %p322 = pneg %p108
        $region46: #{tpu_custom_call.1} parent=27 // pred_check_branch
          %324 = sbr.rel (%p322) target = $region48
        $region47: #{tpu_custom_call.1} parent=27 // pred_region
          %s326 = ssub.s32 16, 16
          %327 = vsyncadd %s319, %s326
          %s328 = smul.addr %s26, 16
          %s329 = scalar_lea.hbm %s2, %s328
          %s331 = sshll.u32 %s321, 4
          %s332 = int_to_ptr.vmem [resolvable:$true] %s331
          %334 = dma.vmem_to_hbm [thread:$0]  %s332, 16, %s329, %s319
        $region48: #{tpu_custom_call.1} parent=27 // pred_fallthru
          _
      $region28: #{tpu_custom_call.1} parent=5 // pred_fallthru
        _
      %p335 = scmp.le.s32.totalorder 2, %s17
      // Predicated region
      $region49: #{tpu_custom_call.1} parent=5 // pred_check
        %p336 = pneg %p335
      $region50: #{tpu_custom_call.1} parent=5 // pred_check_branch
        %338 = sbr.rel (%p336) target = $region52
      $region51: #{tpu_custom_call.1} parent=5 // pred_region
        %s339 = ssub.s32 %s17, 2
        // Predicated region
        $region53: #{tpu_custom_call.1} parent=51 // pred_check
          %p340 = pneg %p114
        $region54: #{tpu_custom_call.1} parent=51 // pred_check_branch
          %342 = sbr.rel (%p340) target = $region56
        $region55: #{tpu_custom_call.1} parent=51 // pred_region
          %s343 = sand.u32 %s99, 1
          %s344 = scalar_lea.sflag [#allocation5], %s343
          %s345 = sand.u32 %s99, 1
          %s346 = scalar_lea.vmem [#allocation8], %s345
          %347 = dma.done %s344, 16
        $region56: #{tpu_custom_call.1} parent=51 // pred_fallthru
          _
      $region52: #{tpu_custom_call.1} parent=5 // pred_fallthru
        _
    $region6: #{tpu_custom_call.1} parent=1 // loop_footer
      %s21 = sadd.s32 1, %s17
    $region7: #{tpu_custom_call.1} parent=1 // loop_footer_branch
      %16 = sbr.rel target = $region3
    $region8: #{tpu_custom_call.1} parent=1 // loop_exit
      _
    %348 = vsyncpa [#allocation4], 1
    %s349 = scalar_lea.sflag [#allocation4], 1
    %350 = vsyncpa %s349, 1
    %351 = vsyncpa [#allocation7], 1
    %s352 = scalar_lea.sflag [#allocation7], 1
    %353 = vsyncpa %s352, 1
    %354 = vsyncpa [#allocation5], 1
    %s355 = scalar_lea.sflag [#allocation5], 1
    %356 = vsyncpa %s355, 1

</llo_original>
